<compile_context>
chip_gen: v7x
topology: tpu7x:2x2x1
jax: 0.10.0
libtpu: 0.0.40
codegen_flags: <defaults>
</compile_context>

<pallas_src>
import functools

import jax
import jax.numpy as jnp
from jax import lax
from jax.experimental import pallas as pl
from jax.experimental.pallas import tpu as pltpu

_LANE = 128


def _round_up(n, m):
    return ((n + m - 1) // m) * m


def mpc_net_kernel(x_ref, w1_ref, b1_ref, w2_ref, b2_ref,
                   w3_ref, b3_ref, w4_ref, b4_ref, o_ref, *, sub_b):
    cdt = w1_ref.dtype  # compute (matmul input) dtype, e.g. bfloat16
    # Weights + biases are fully VMEM-resident; load once per grid step.
    w1, w2, w3, w4 = w1_ref[...], w2_ref[...], w3_ref[...], w4_ref[...]
    b1, b2, b3, b4 = b1_ref[...], b2_ref[...], b3_ref[...], b4_ref[...]

    n_sub = x_ref.shape[0] // sub_b  # static

    def body(s, carry):
        r = pl.multiple_of(s * sub_b, sub_b)
        h = x_ref[pl.ds(r, sub_b), :]
        # fc1 + ReLU
        h = jnp.dot(h, w1, preferred_element_type=jnp.float32)
        h = jnp.maximum(h + b1, 0.0).astype(cdt)
        # fc2 + ReLU
        h = jnp.dot(h, w2, preferred_element_type=jnp.float32)
        h = jnp.maximum(h + b2, 0.0).astype(cdt)
        # fc3 + ReLU
        h = jnp.dot(h, w3, preferred_element_type=jnp.float32)
        h = jnp.maximum(h + b3, 0.0).astype(cdt)
        # fc4 (no activation)
        h = jnp.dot(h, w4, preferred_element_type=jnp.float32)
        o_ref[pl.ds(r, sub_b), :] = (h + b4).astype(o_ref.dtype)
        return carry

    lax.fori_loop(0, n_sub, body, 0, unroll=True)


@functools.partial(jax.jit, static_argnames=("block_b", "sub_b", "dtype"))
def mpc_net_forward(x, params, block_b=512, sub_b=128, dtype=jnp.bfloat16):
    assert block_b % sub_b == 0
    w1, b1, w2, b2, w3, b3, w4, b4 = params
    B, input_dim = x.shape
    h1, h2, h3 = w1.shape[1], w2.shape[1], w3.shape[1]
    output_dim = w4.shape[1]

    # Lane-dense padded feature dims for everything the kernel touches.
    in_pad = _round_up(max(input_dim, _LANE), _LANE)
    h1p = _round_up(max(h1, _LANE), _LANE)
    h2p = _round_up(max(h2, _LANE), _LANE)
    h3p = _round_up(max(h3, _LANE), _LANE)
    out_pad = _round_up(max(output_dim, _LANE), _LANE)

    # Batch tile: multiple of sub_b, capped at block_b; pad B so the grid has at
    # least 2 parallel steps (keeps both v7x TensorCores busy).
    bb = max(sub_b, min(block_b, _round_up(pl.cdiv(B, 2), sub_b)))
    n_steps = max(2, pl.cdiv(B, bb))
    b_pad = n_steps * bb

    # Zero-padded, dtype-cast operands (padded rows/cols contribute exact zeros:
    # ReLU(0*x + 0) = 0 feeds zero-padded rows of the next layer).
    xp = jnp.zeros((b_pad, in_pad), dtype).at[:B, :input_dim].set(x.astype(dtype))
    w1p = jnp.zeros((in_pad, h1p), dtype).at[:input_dim, :h1].set(w1.astype(dtype))
    b1p = jnp.zeros((1, h1p), jnp.float32).at[:, :h1].set(b1)
    w2p = jnp.zeros((h1p, h2p), dtype).at[:h1, :h2].set(w2.astype(dtype))
    b2p = jnp.zeros((1, h2p), jnp.float32).at[:, :h2].set(b2)
    w3p = jnp.zeros((h2p, h3p), dtype).at[:h2, :h3].set(w3.astype(dtype))
    b3p = jnp.zeros((1, h3p), jnp.float32).at[:, :h3].set(b3)
    w4p = jnp.zeros((h3p, out_pad), dtype).at[:h3, :output_dim].set(w4.astype(dtype))
    b4p = jnp.zeros((1, out_pad), jnp.float32).at[:, :output_dim].set(b4)

    full = lambda arr: pl.BlockSpec(arr.shape, lambda i: (0, 0))

    out = pl.pallas_call(
        functools.partial(mpc_net_kernel, sub_b=sub_b),
        out_shape=jax.ShapeDtypeStruct((b_pad, out_pad), jnp.float32),
        grid=(n_steps,),
        in_specs=[
            pl.BlockSpec((bb, in_pad), lambda i: (i, 0)),
            full(w1p), full(b1p),
            full(w2p), full(b2p),
            full(w3p), full(b3p),
            full(w4p), full(b4p),
        ],
        out_specs=pl.BlockSpec((bb, out_pad), lambda i: (i, 0)),
        compiler_params=pltpu.CompilerParams(
            dimension_semantics=("parallel",)),
    )(xp, w1p, b1p, w2p, b2p, w3p, b3p, w4p, b4p)

    return out[:B, :output_dim]


def init_params(key, input_dim, output_dim):
    """Deterministic synthetic init matching nn.Linear shapes (stored as (in, out))."""
    dims = [(input_dim, 64), (64, 64), (64, 32), (32, output_dim)]
    params = []
    for din, dout in dims:
        kw, kb, key = jax.random.split(key, 3)
        bound = 1.0 / jnp.sqrt(din)
        w = jax.random.uniform(kw, (din, dout), jnp.float32, -bound, bound)
        b = jax.random.uniform(kb, (1, dout), jnp.float32, -bound, bound)
        params += [w, b]
    return tuple(params)


def reference_forward(x, params, dtype=jnp.bfloat16):
    """Pure-JAX reference using the same bf16-input / f32-accumulate recipe."""
    w1, b1, w2, b2, w3, b3, w4, b4 = params

    def layer(h, w, b, act):
        h = jnp.dot(h.astype(dtype), w.astype(dtype),
                    preferred_element_type=jnp.float32) + b
        return jnp.maximum(h, 0.0) if act else h

    h = layer(x, w1, b1, True)
    h = layer(h, w2, b2, True)
    h = layer(h, w3, b3, True)
    return layer(h, w4, b4, False)


if __name__ == "__main__":
    key = jax.random.PRNGKey(0)
    input_dim, output_dim, batch = 8, 4, 8

    kx, kp = jax.random.split(key)
    x = jax.random.normal(kx, (batch, input_dim), jnp.float32)
    params = init_params(kp, input_dim, output_dim)

    out = mpc_net_forward(x, params)
    out = jax.block_until_ready(out)

    ref = reference_forward(x, params)
    assert out.shape == (batch, output_dim)
    assert jnp.allclose(out, ref, atol=1e-2, rtol=1e-2), "mismatch vs reference"

    print("KERNEL_OK")
</pallas_src>

<mosaic_0001>
module attributes {stable_mosaic.version = 11 : i64} {
  func.func @mpc_net_kernel(%arg0: i32, %arg1: memref<128x128xbf16, #tpu.memory_space<vmem>>, %arg2: memref<128x128xbf16, #tpu.memory_space<vmem>>, %arg3: memref<1x128xf32, #tpu.memory_space<vmem>>, %arg4: memref<128x128xbf16, #tpu.memory_space<vmem>>, %arg5: memref<1x128xf32, #tpu.memory_space<vmem>>, %arg6: memref<128x128xbf16, #tpu.memory_space<vmem>>, %arg7: memref<1x128xf32, #tpu.memory_space<vmem>>, %arg8: memref<128x128xbf16, #tpu.memory_space<vmem>>, %arg9: memref<1x128xf32, #tpu.memory_space<vmem>>, %arg10: memref<128x128xf32, #tpu.memory_space<vmem>>) attributes {dimension_semantics = [#tpu.dimension_semantics<parallel>], iteration_bounds = array<i64: 2>, scalar_prefetch = 0 : i64, scratch_operands = 0 : i64, tpu.core_type = #tpu.core_type<tc>, window_params = [{transform_indices = @transform_0, window_bounds = array<i64: 128, 128>}, {pipeline_mode = #tpu.pipeline_mode<synchronous>, transform_indices = @transform_1, window_bounds = array<i64: 128, 128>}, {pipeline_mode = #tpu.pipeline_mode<synchronous>, transform_indices = @transform_2, window_bounds = array<i64: 1, 128>}, {pipeline_mode = #tpu.pipeline_mode<synchronous>, transform_indices = @transform_3, window_bounds = array<i64: 128, 128>}, {pipeline_mode = #tpu.pipeline_mode<synchronous>, transform_indices = @transform_4, window_bounds = array<i64: 1, 128>}, {pipeline_mode = #tpu.pipeline_mode<synchronous>, transform_indices = @transform_5, window_bounds = array<i64: 128, 128>}, {pipeline_mode = #tpu.pipeline_mode<synchronous>, transform_indices = @transform_6, window_bounds = array<i64: 1, 128>}, {pipeline_mode = #tpu.pipeline_mode<synchronous>, transform_indices = @transform_7, window_bounds = array<i64: 128, 128>}, {pipeline_mode = #tpu.pipeline_mode<synchronous>, transform_indices = @transform_8, window_bounds = array<i64: 1, 128>}, {transform_indices = @transform_9, window_bounds = array<i64: 128, 128>}]} {
    %c0 = arith.constant 0 : index
    %c0_0 = arith.constant 0 : index
    %0 = vector.load %arg2[%c0, %c0_0] : memref<128x128xbf16, #tpu.memory_space<vmem>>, vector<128x128xbf16>
    %c0_1 = arith.constant 0 : index
    %c0_2 = arith.constant 0 : index
    %1 = vector.load %arg4[%c0_1, %c0_2] : memref<128x128xbf16, #tpu.memory_space<vmem>>, vector<128x128xbf16>
    %c0_3 = arith.constant 0 : index
    %c0_4 = arith.constant 0 : index
    %2 = vector.load %arg6[%c0_3, %c0_4] : memref<128x128xbf16, #tpu.memory_space<vmem>>, vector<128x128xbf16>
    %c0_5 = arith.constant 0 : index
    %c0_6 = arith.constant 0 : index
    %3 = vector.load %arg8[%c0_5, %c0_6] : memref<128x128xbf16, #tpu.memory_space<vmem>>, vector<128x128xbf16>
    %c0_7 = arith.constant 0 : index
    %c0_8 = arith.constant 0 : index
    %4 = vector.load %arg3[%c0_7, %c0_8] : memref<1x128xf32, #tpu.memory_space<vmem>>, vector<1x128xf32>
    %c0_9 = arith.constant 0 : index
    %c0_10 = arith.constant 0 : index
    %5 = vector.load %arg5[%c0_9, %c0_10] : memref<1x128xf32, #tpu.memory_space<vmem>>, vector<1x128xf32>
    %c0_11 = arith.constant 0 : index
    %c0_12 = arith.constant 0 : index
    %6 = vector.load %arg7[%c0_11, %c0_12] : memref<1x128xf32, #tpu.memory_space<vmem>>, vector<1x128xf32>
    %c0_13 = arith.constant 0 : index
    %c0_14 = arith.constant 0 : index
    %7 = vector.load %arg9[%c0_13, %c0_14] : memref<1x128xf32, #tpu.memory_space<vmem>>, vector<1x128xf32>
    %c0_i32 = arith.constant 0 : i32
    %c128_i32 = arith.constant 128 : i32
    %8 = arith.muli %c0_i32, %c128_i32 : i32
    %9 = tpu.assume_multiple %8, 128 : i32
    %10 = arith.index_cast %9 : i32 to index
    %c0_15 = arith.constant 0 : index
    %11 = vector.load %arg1[%10, %c0_15] : memref<128x128xbf16, #tpu.memory_space<vmem>>, vector<128x128xbf16>
    %cst = arith.constant dense<0.000000e+00> : vector<128x128xf32>
    %12 = tpu.matmul %11, %0, %cst {dimension_numbers = #tpu.dot_dimension_numbers<[1], [0], [0], [1], [0, 0, 1, 1], [], []>} : vector<128x128xbf16>, vector<128x128xbf16>, vector<128x128xf32> -> vector<128x128xf32>
    %13 = vector.broadcast %4 : vector<1x128xf32> to vector<128x128xf32>
    %14 = arith.addf %12, %13 : vector<128x128xf32>
    %cst_16 = arith.constant 0.000000e+00 : f32
    %15 = vector.broadcast %cst_16 : f32 to vector<128x128xf32>
    %16 = arith.maximumf %14, %15 : vector<128x128xf32>
    %17 = arith.truncf %16 : vector<128x128xf32> to vector<128x128xbf16>
    %cst_17 = arith.constant dense<0.000000e+00> : vector<128x128xf32>
    %18 = tpu.matmul %17, %1, %cst_17 {dimension_numbers = #tpu.dot_dimension_numbers<[1], [0], [0], [1], [0, 0, 1, 1], [], []>} : vector<128x128xbf16>, vector<128x128xbf16>, vector<128x128xf32> -> vector<128x128xf32>
    %19 = vector.broadcast %5 : vector<1x128xf32> to vector<128x128xf32>
    %20 = arith.addf %18, %19 : vector<128x128xf32>
    %cst_18 = arith.constant 0.000000e+00 : f32
    %21 = vector.broadcast %cst_18 : f32 to vector<128x128xf32>
    %22 = arith.maximumf %20, %21 : vector<128x128xf32>
    %23 = arith.truncf %22 : vector<128x128xf32> to vector<128x128xbf16>
    %cst_19 = arith.constant dense<0.000000e+00> : vector<128x128xf32>
    %24 = tpu.matmul %23, %2, %cst_19 {dimension_numbers = #tpu.dot_dimension_numbers<[1], [0], [0], [1], [0, 0, 1, 1], [], []>} : vector<128x128xbf16>, vector<128x128xbf16>, vector<128x128xf32> -> vector<128x128xf32>
    %25 = vector.broadcast %6 : vector<1x128xf32> to vector<128x128xf32>
    %26 = arith.addf %24, %25 : vector<128x128xf32>
    %cst_20 = arith.constant 0.000000e+00 : f32
    %27 = vector.broadcast %cst_20 : f32 to vector<128x128xf32>
    %28 = arith.maximumf %26, %27 : vector<128x128xf32>
    %29 = arith.truncf %28 : vector<128x128xf32> to vector<128x128xbf16>
    %cst_21 = arith.constant dense<0.000000e+00> : vector<128x128xf32>
    %30 = tpu.matmul %29, %3, %cst_21 {dimension_numbers = #tpu.dot_dimension_numbers<[1], [0], [0], [1], [0, 0, 1, 1], [], []>} : vector<128x128xbf16>, vector<128x128xbf16>, vector<128x128xf32> -> vector<128x128xf32>
    %31 = vector.broadcast %7 : vector<1x128xf32> to vector<128x128xf32>
    %32 = arith.addf %30, %31 : vector<128x128xf32>
    %33 = arith.index_cast %9 : i32 to index
    %c0_22 = arith.constant 0 : index
    %34 = vector.load %arg10[%33, %c0_22] : memref<128x128xf32, #tpu.memory_space<vmem>>, vector<128x128xf32>
    tpu.vector_store %arg10[%33, %c0_22], %32 {strides = array<i32>} : memref<128x128xf32, #tpu.memory_space<vmem>>, vector<128x128xf32>,
    %c1_i32 = arith.constant 1 : i32
    return
  }
  func.func @transform_0(%arg0: i32) -> (i32, i32) {
    %c0_i32 = arith.constant 0 : i32
    %c0_i32_0 = arith.constant 0 : i32
    return %arg0, %c0_i32 : i32, i32
  }
  func.func @transform_1(%arg0: i32) -> (i32, i32) {
    %c0_i32 = arith.constant 0 : i32
    %c0_i32_0 = arith.constant 0 : i32
    %c0_i32_1 = arith.constant 0 : i32
    return %c0_i32, %c0_i32_0 : i32, i32
  }
  func.func @transform_2(%arg0: i32) -> (i32, i32) {
    %c0_i32 = arith.constant 0 : i32
    %c0_i32_0 = arith.constant 0 : i32
    %c0_i32_1 = arith.constant 0 : i32
    return %c0_i32, %c0_i32_0 : i32, i32
  }
  func.func @transform_3(%arg0: i32) -> (i32, i32) {
    %c0_i32 = arith.constant 0 : i32
    %c0_i32_0 = arith.constant 0 : i32
    %c0_i32_1 = arith.constant 0 : i32
    return %c0_i32, %c0_i32_0 : i32, i32
  }
  func.func @transform_4(%arg0: i32) -> (i32, i32) {
    %c0_i32 = arith.constant 0 : i32
    %c0_i32_0 = arith.constant 0 : i32
    %c0_i32_1 = arith.constant 0 : i32
    return %c0_i32, %c0_i32_0 : i32, i32
  }
  func.func @transform_5(%arg0: i32) -> (i32, i32) {
    %c0_i32 = arith.constant 0 : i32
    %c0_i32_0 = arith.constant 0 : i32
    %c0_i32_1 = arith.constant 0 : i32
    return %c0_i32, %c0_i32_0 : i32, i32
  }
  func.func @transform_6(%arg0: i32) -> (i32, i32) {
    %c0_i32 = arith.constant 0 : i32
    %c0_i32_0 = arith.constant 0 : i32
    %c0_i32_1 = arith.constant 0 : i32
    return %c0_i32, %c0_i32_0 : i32, i32
  }
  func.func @transform_7(%arg0: i32) -> (i32, i32) {
    %c0_i32 = arith.constant 0 : i32
    %c0_i32_0 = arith.constant 0 : i32
    %c0_i32_1 = arith.constant 0 : i32
    return %c0_i32, %c0_i32_0 : i32, i32
  }
  func.func @transform_8(%arg0: i32) -> (i32, i32) {
    %c0_i32 = arith.constant 0 : i32
    %c0_i32_0 = arith.constant 0 : i32
    %c0_i32_1 = arith.constant 0 : i32
    return %c0_i32, %c0_i32_0 : i32, i32
  }
  func.func @transform_9(%arg0: i32) -> (i32, i32) {
    %c0_i32 = arith.constant 0 : i32
    %c0_i32_0 = arith.constant 0 : i32
    return %arg0, %c0_i32 : i32, i32
  }
}

</mosaic_0001>

<llo_original>
// kernel: mpc_net_forward.1
$region0: #{mpc_net_forward.1}
  #allocation0 [shape = 'u32[]', space=smem, size = 0x4, offset = 0x4, fixed_abs, tag = 'smem constant byte address 0x4 - core index']
  #allocation1 [shape = 'u32[144,128]{1,0:T(1,128)}', space=vmem, size = 0x12000, scoped, tag = 'internal scratch']
  %s0 = inlined_call_operand.vmem [shape: bf16[256,128], index: 0, kind: input, shape index: {}]
  %s1 = inlined_call_operand.vmem [shape: bf16[128,128], index: 1, kind: input, shape index: {}]
  %s2 = inlined_call_operand.vmem [shape: f32[1,128], index: 2, kind: input, shape index: {}]
  %s3 = inlined_call_operand.vmem [shape: bf16[128,128], index: 3, kind: input, shape index: {}]
  %s4 = inlined_call_operand.vmem [shape: f32[1,128], index: 4, kind: input, shape index: {}]
  %s5 = inlined_call_operand.vmem [shape: bf16[128,128], index: 5, kind: input, shape index: {}]
  %s6 = inlined_call_operand.vmem [shape: f32[1,128], index: 6, kind: input, shape index: {}]
  %s7 = inlined_call_operand.vmem [shape: bf16[128,128], index: 7, kind: input, shape index: {}]
  %s8 = inlined_call_operand.vmem [shape: f32[1,128], index: 8, kind: input, shape index: {}]
  %s9 = inlined_call_operand.vmem [shape: f32[256,128], index: 9, kind: output, shape index: {}]
  %s10 = sld [smem:[#allocation0]]
  $region69: #{mpc_net_forward.1} parent=0
    _
  %s12 = ssub.s32 1, %s10
  %s13 = scalar_select 0, %s12, %s10
  loop: start=0, step=1, limit=4
  $region2: #{mpc_net_forward.1} parent=0 // loop_pre_header
    _
  $region3: #{mpc_net_forward.1} parent=0 // loop_header
    %s15 = sphi 0, %s19
    %p16 = scmp.ge.s32.totalorder %s15, 4
    %s25 = sphi 0, %s27
    %s28 = sphi 0, %s25
    %s29 = sphi 0, %s28
    %s45 = sphi 0, %s29
    %s49 = sphi 0, %s49
    %s51 = sphi 0, %s49
    %s52 = sphi 0, %s51
    %s66 = sphi 0, %s52
    %s70 = sphi 0, %s70
    %s72 = sphi 0, %s70
    %s73 = sphi 0, %s72
    %s87 = sphi 0, %s73
    %s91 = sphi 0, %s91
    %s93 = sphi 0, %s91
    %s94 = sphi 0, %s93
    %s108 = sphi 0, %s94
    %s112 = sphi 0, %s112
    %s114 = sphi 0, %s112
    %s115 = sphi 0, %s114
    %s129 = sphi 0, %s115
    %s133 = sphi 0, %s133
    %s135 = sphi 0, %s133
    %s136 = sphi 0, %s135
    %s150 = sphi 0, %s136
    %s154 = sphi 0, %s154
    %s156 = sphi 0, %s154
    %s157 = sphi 0, %s156
    %s171 = sphi 0, %s157
    %s175 = sphi 0, %s175
    %s177 = sphi 0, %s175
    %s178 = sphi 0, %s177
    %s192 = sphi 0, %s178
    %s196 = sphi 0, %s196
    %s198 = sphi 0, %s196
    %s199 = sphi 0, %s198
    %s213 = sphi 0, %s199
    %s219 = sphi 0, %s221
    %s222 = sphi 0, %s219
    %s223 = sphi 0, %s222
    %s239 = sphi 0, %s223
  $region4: #{mpc_net_forward.1} parent=0 // loop_header_branch
    %18 = sbr.rel (%p16) target = $region8
  $region5: #{mpc_net_forward.1} parent=0 // loop_body
    %s20 = ssub.s32 %s15, 1
    %s21 = ssub.s32 %s15, 2
    %s22 = sadd.s32 %s15, 1
    %s23 = ssub.s32 %s15, %s22
    %p24 = scmp.eq.s32.totalorder %s23, 0
    %s26 = sadd.s32 %s25, 1
    %s27 = scalar_select %p24, %s25, %s26
    %p30 = pneg %p24
    %p31 = scmp.eq.s32.totalorder %s15, 1
    %p32 = por %p30, %p31
    %p33 = scmp.ne.s32.totalorder %s25, %s28
    %p34 = scmp.eq.s32.totalorder %s15, 0
    %p35 = por %p33, %p34
    %p36 = scmp.ne.s32.totalorder %s25, %s28
    %p37 = scmp.eq.s32.totalorder %s20, 1
    %p38 = por %p36, %p37
    %p39 = scmp.ne.s32.totalorder %s28, %s29
    %p40 = scmp.eq.s32.totalorder %s20, 0
    %p41 = por %p39, %p40
    %p42 = scmp.ne.s32.totalorder %s28, %s29
    %p43 = scmp.eq.s32.totalorder %s21, 1
    %p44 = por %p42, %p43
    %p46 = scmp.ne.s32.totalorder %s29, %s45
    %p47 = scmp.eq.s32.totalorder %s21, 0
    %p48 = por %p46, %p47
    %s50 = sadd.s32 %s49, 1
    %p53 = scmp.eq.s32.totalorder %s15, 1
    %p54 = scmp.ne.s32.totalorder %s49, %s51
    %p55 = scmp.eq.s32.totalorder %s15, 0
    %p56 = por %p54, %p55
    %p57 = scmp.ne.s32.totalorder %s49, %s51
    %p58 = scmp.eq.s32.totalorder %s20, 1
    %p59 = por %p57, %p58
    %p60 = scmp.ne.s32.totalorder %s51, %s52
    %p61 = scmp.eq.s32.totalorder %s20, 0
    %p62 = por %p60, %p61
    %p63 = scmp.ne.s32.totalorder %s51, %s52
    %p64 = scmp.eq.s32.totalorder %s21, 1
    %p65 = por %p63, %p64
    %p67 = scmp.ne.s32.totalorder %s52, %s66
    %p68 = scmp.eq.s32.totalorder %s21, 0
    %p69 = por %p67, %p68
    %s71 = sadd.s32 %s70, 1
    %p74 = scmp.eq.s32.totalorder %s15, 1
    %p75 = scmp.ne.s32.totalorder %s70, %s72
    %p76 = scmp.eq.s32.totalorder %s15, 0
    %p77 = por %p75, %p76
    %p78 = scmp.ne.s32.totalorder %s70, %s72
    %p79 = scmp.eq.s32.totalorder %s20, 1
    %p80 = por %p78, %p79
    %p81 = scmp.ne.s32.totalorder %s72, %s73
    %p82 = scmp.eq.s32.totalorder %s20, 0
    %p83 = por %p81, %p82
    %p84 = scmp.ne.s32.totalorder %s72, %s73
    %p85 = scmp.eq.s32.totalorder %s21, 1
    %p86 = por %p84, %p85
    %p88 = scmp.ne.s32.totalorder %s73, %s87
    %p89 = scmp.eq.s32.totalorder %s21, 0
    %p90 = por %p88, %p89
    %s92 = sadd.s32 %s91, 1
    %p95 = scmp.eq.s32.totalorder %s15, 1
    %p96 = scmp.ne.s32.totalorder %s91, %s93
    %p97 = scmp.eq.s32.totalorder %s15, 0
    %p98 = por %p96, %p97
    %p99 = scmp.ne.s32.totalorder %s91, %s93
    %p100 = scmp.eq.s32.totalorder %s20, 1
    %p101 = por %p99, %p100
    %p102 = scmp.ne.s32.totalorder %s93, %s94
    %p103 = scmp.eq.s32.totalorder %s20, 0
    %p104 = por %p102, %p103
    %p105 = scmp.ne.s32.totalorder %s93, %s94
    %p106 = scmp.eq.s32.totalorder %s21, 1
    %p107 = por %p105, %p106
    %p109 = scmp.ne.s32.totalorder %s94, %s108
    %p110 = scmp.eq.s32.totalorder %s21, 0
    %p111 = por %p109, %p110
    %s113 = sadd.s32 %s112, 1
    %p116 = scmp.eq.s32.totalorder %s15, 1
    %p117 = scmp.ne.s32.totalorder %s112, %s114
    %p118 = scmp.eq.s32.totalorder %s15, 0
    %p119 = por %p117, %p118
    %p120 = scmp.ne.s32.totalorder %s112, %s114
    %p121 = scmp.eq.s32.totalorder %s20, 1
    %p122 = por %p120, %p121
    %p123 = scmp.ne.s32.totalorder %s114, %s115
    %p124 = scmp.eq.s32.totalorder %s20, 0
    %p125 = por %p123, %p124
    %p126 = scmp.ne.s32.totalorder %s114, %s115
    %p127 = scmp.eq.s32.totalorder %s21, 1
    %p128 = por %p126, %p127
    %p130 = scmp.ne.s32.totalorder %s115, %s129
    %p131 = scmp.eq.s32.totalorder %s21, 0
    %p132 = por %p130, %p131
    %s134 = sadd.s32 %s133, 1
    %p137 = scmp.eq.s32.totalorder %s15, 1
    %p138 = scmp.ne.s32.totalorder %s133, %s135
    %p139 = scmp.eq.s32.totalorder %s15, 0
    %p140 = por %p138, %p139
    %p141 = scmp.ne.s32.totalorder %s133, %s135
    %p142 = scmp.eq.s32.totalorder %s20, 1
    %p143 = por %p141, %p142
    %p144 = scmp.ne.s32.totalorder %s135, %s136
    %p145 = scmp.eq.s32.totalorder %s20, 0
    %p146 = por %p144, %p145
    %p147 = scmp.ne.s32.totalorder %s135, %s136
    %p148 = scmp.eq.s32.totalorder %s21, 1
    %p149 = por %p147, %p148
    %p151 = scmp.ne.s32.totalorder %s136, %s150
    %p152 = scmp.eq.s32.totalorder %s21, 0
    %p153 = por %p151, %p152
    %s155 = sadd.s32 %s154, 1
    %p158 = scmp.eq.s32.totalorder %s15, 1
    %p159 = scmp.ne.s32.totalorder %s154, %s156
    %p160 = scmp.eq.s32.totalorder %s15, 0
    %p161 = por %p159, %p160
    %p162 = scmp.ne.s32.totalorder %s154, %s156
    %p163 = scmp.eq.s32.totalorder %s20, 1
    %p164 = por %p162, %p163
    %p165 = scmp.ne.s32.totalorder %s156, %s157
    %p166 = scmp.eq.s32.totalorder %s20, 0
    %p167 = por %p165, %p166
    %p168 = scmp.ne.s32.totalorder %s156, %s157
    %p169 = scmp.eq.s32.totalorder %s21, 1
    %p170 = por %p168, %p169
    %p172 = scmp.ne.s32.totalorder %s157, %s171
    %p173 = scmp.eq.s32.totalorder %s21, 0
    %p174 = por %p172, %p173
    %s176 = sadd.s32 %s175, 1
    %p179 = scmp.eq.s32.totalorder %s15, 1
    %p180 = scmp.ne.s32.totalorder %s175, %s177
    %p181 = scmp.eq.s32.totalorder %s15, 0
    %p182 = por %p180, %p181
    %p183 = scmp.ne.s32.totalorder %s175, %s177
    %p184 = scmp.eq.s32.totalorder %s20, 1
    %p185 = por %p183, %p184
    %p186 = scmp.ne.s32.totalorder %s177, %s178
    %p187 = scmp.eq.s32.totalorder %s20, 0
    %p188 = por %p186, %p187
    %p189 = scmp.ne.s32.totalorder %s177, %s178
    %p190 = scmp.eq.s32.totalorder %s21, 1
    %p191 = por %p189, %p190
    %p193 = scmp.ne.s32.totalorder %s178, %s192
    %p194 = scmp.eq.s32.totalorder %s21, 0
    %p195 = por %p193, %p194
    %s197 = sadd.s32 %s196, 1
    %p200 = scmp.eq.s32.totalorder %s15, 1
    %p201 = scmp.ne.s32.totalorder %s196, %s198
    %p202 = scmp.eq.s32.totalorder %s15, 0
    %p203 = por %p201, %p202
    %p204 = scmp.ne.s32.totalorder %s196, %s198
    %p205 = scmp.eq.s32.totalorder %s20, 1
    %p206 = por %p204, %p205
    %p207 = scmp.ne.s32.totalorder %s198, %s199
    %p208 = scmp.eq.s32.totalorder %s20, 0
    %p209 = por %p207, %p208
    %p210 = scmp.ne.s32.totalorder %s198, %s199
    %p211 = scmp.eq.s32.totalorder %s21, 1
    %p212 = por %p210, %p211
    %p214 = scmp.ne.s32.totalorder %s199, %s213
    %p215 = scmp.eq.s32.totalorder %s21, 0
    %p216 = por %p214, %p215
    %s217 = ssub.s32 %s15, %s22
    %p218 = scmp.eq.s32.totalorder %s217, 0
    %s220 = sadd.s32 %s219, 1
    %s221 = scalar_select %p218, %s219, %s220
    %p224 = pneg %p218
    %p225 = scmp.eq.s32.totalorder %s15, 1
    %p226 = por %p224, %p225
    %p227 = scmp.ne.s32.totalorder %s219, %s222
    %p228 = scmp.eq.s32.totalorder %s15, 0
    %p229 = por %p227, %p228
    %p230 = scmp.ne.s32.totalorder %s219, %s222
    %p231 = scmp.eq.s32.totalorder %s20, 1
    %p232 = por %p230, %p231
    %p233 = scmp.ne.s32.totalorder %s222, %s223
    %p234 = scmp.eq.s32.totalorder %s20, 0
    %p235 = por %p233, %p234
    %p236 = scmp.ne.s32.totalorder %s222, %s223
    %p237 = scmp.eq.s32.totalorder %s21, 1
    %p238 = por %p236, %p237
    %p240 = scmp.ne.s32.totalorder %s223, %s239
    %p241 = scmp.eq.s32.totalorder %s21, 0
    %p242 = por %p240, %p241
    %p243 = scmp.le.s32.totalorder 1, %s15
    %p244 = scmp.lt.s32.totalorder %s15, 3
    %p245 = pnand %p243, %p244
    %p246 = pneg %p245
    // Predicated region
    $region9: #{mpc_net_forward.1} parent=5 // pred_check
      _
    $region10: #{mpc_net_forward.1} parent=5 // pred_check_branch
      %248 = sbr.rel (%p245) target = $region12
    $region11: #{mpc_net_forward.1} parent=5 // pred_region
      %s249 = ssub.s32 %s15, 1
      // Predicated region
      $region13: #{mpc_net_forward.1} parent=11 // pred_check
        %p250 = pneg %p62
      $region14: #{mpc_net_forward.1} parent=11 // pred_check_branch
        %252 = sbr.rel (%p250) target = $region16
      $region15: #{mpc_net_forward.1} parent=11 // pred_region
        _
      $region16: #{mpc_net_forward.1} parent=11 // pred_fallthru
        _
      // Predicated region
      $region17: #{mpc_net_forward.1} parent=11 // pred_check
        %p253 = pneg %p83
      $region18: #{mpc_net_forward.1} parent=11 // pred_check_branch
        %255 = sbr.rel (%p253) target = $region20
      $region19: #{mpc_net_forward.1} parent=11 // pred_region
        _
      $region20: #{mpc_net_forward.1} parent=11 // pred_fallthru
        _
      // Predicated region
      $region21: #{mpc_net_forward.1} parent=11 // pred_check
        %p256 = pneg %p104
      $region22: #{mpc_net_forward.1} parent=11 // pred_check_branch
        %258 = sbr.rel (%p256) target = $region24
      $region23: #{mpc_net_forward.1} parent=11 // pred_region
        _
      $region24: #{mpc_net_forward.1} parent=11 // pred_fallthru
        _
      // Predicated region
      $region25: #{mpc_net_forward.1} parent=11 // pred_check
        %p259 = pneg %p125
      $region26: #{mpc_net_forward.1} parent=11 // pred_check_branch
        %261 = sbr.rel (%p259) target = $region28
      $region27: #{mpc_net_forward.1} parent=11 // pred_region
        _
      $region28: #{mpc_net_forward.1} parent=11 // pred_fallthru
        _
      // Predicated region
      $region29: #{mpc_net_forward.1} parent=11 // pred_check
        %p262 = pneg %p146
      $region30: #{mpc_net_forward.1} parent=11 // pred_check_branch
        %264 = sbr.rel (%p262) target = $region32
      $region31: #{mpc_net_forward.1} parent=11 // pred_region
        _
      $region32: #{mpc_net_forward.1} parent=11 // pred_fallthru
        _
      // Predicated region
      $region33: #{mpc_net_forward.1} parent=11 // pred_check
        %p265 = pneg %p167
      $region34: #{mpc_net_forward.1} parent=11 // pred_check_branch
        %267 = sbr.rel (%p265) target = $region36
      $region35: #{mpc_net_forward.1} parent=11 // pred_region
        _
      $region36: #{mpc_net_forward.1} parent=11 // pred_fallthru
        _
      // Predicated region
      $region37: #{mpc_net_forward.1} parent=11 // pred_check
        %p268 = pneg %p188
      $region38: #{mpc_net_forward.1} parent=11 // pred_check_branch
        %270 = sbr.rel (%p268) target = $region40
      $region39: #{mpc_net_forward.1} parent=11 // pred_region
        _
      $region40: #{mpc_net_forward.1} parent=11 // pred_fallthru
        _
      // Predicated region
      $region41: #{mpc_net_forward.1} parent=11 // pred_check
        %p271 = pneg %p209
      $region42: #{mpc_net_forward.1} parent=11 // pred_check_branch
        %273 = sbr.rel (%p271) target = $region44
      $region43: #{mpc_net_forward.1} parent=11 // pred_region
        _
      $region44: #{mpc_net_forward.1} parent=11 // pred_fallthru
        _
    $region12: #{mpc_net_forward.1} parent=5 // pred_fallthru
      _
    %p274 = scmp.lt.s32.totalorder %s15, 2
    // Predicated region
    $region45: #{mpc_net_forward.1} parent=5 // pred_check
      %p275 = pneg %p274
    $region46: #{mpc_net_forward.1} parent=5 // pred_check_branch
      %277 = sbr.rel (%p275) target = $region48
    $region47: #{mpc_net_forward.1} parent=5 // pred_region
      // Predicated region
      $region49: #{mpc_net_forward.1} parent=47 // pred_check
        %p278 = pneg %p35
      $region50: #{mpc_net_forward.1} parent=47 // pred_check_branch
        %280 = sbr.rel (%p278) target = $region52
      $region51: #{mpc_net_forward.1} parent=47 // pred_region
        %s281 = smul.u32 16, %s15
        %p282 = scmp.lt.s32.totalorder %s281, 31
        %s283 = scalar_select %p282, %s281, 31
        %s284 = smul.addr %s283, 4
        %s285 = scalar_lea.vmem %s0, %s284
        %s286 = smul.u32 16, %s15
      $region52: #{mpc_net_forward.1} parent=47 // pred_fallthru
        _
    $region48: #{mpc_net_forward.1} parent=5 // pred_fallthru
      _
    %p287 = scmp.le.s32.totalorder 1, %s15
    %p288 = scmp.lt.s32.totalorder %s15, 3
    %p289 = pnand %p287, %p288
    %p290 = pneg %p289
    // Predicated region
    $region53: #{mpc_net_forward.1} parent=5 // pred_check
      _
    $region54: #{mpc_net_forward.1} parent=5 // pred_check_branch
      %292 = sbr.rel (%p289) target = $region56
    $region55: #{mpc_net_forward.1} parent=5 // pred_region
      %s293 = ssub.s32 %s15, 1
      %s294 = smul.u32 16, %s20
      %p295 = scmp.lt.s32.totalorder %s294, 31
      %s296 = scalar_select %p295, %s294, 31
      %s297 = smul.addr %s296, 4
      %s298 = scalar_lea.vmem %s0, %s297
      %p299 = pneg %p41
      %p300 = pneg %p38
      %p301 = pneg %p62
      %p302 = pneg %p59
      %p303 = pneg %p83
      %p304 = pneg %p80
      %p305 = pneg %p104
      %p306 = pneg %p101
      %p307 = pneg %p125
      %p308 = pneg %p122
      %p309 = pneg %p146
      %p310 = pneg %p143
      %p311 = pneg %p167
      %p312 = pneg %p164
      %p313 = pneg %p188
      %p314 = pneg %p185
      %p315 = pneg %p209
      %p316 = pneg %p206
      %p317 = pneg %p235
      %p318 = pneg %p232
      %s319 = smul.u32 16, %s20
      %p320 = scmp.lt.s32.totalorder %s319, 31
      %s321 = scalar_select %p320, %s319, 31
      %s322 = smul.addr %s321, 8
      %s323 = scalar_lea.vmem %s9, %s322
      %s324 = smul.u32 16, %s20
      %p325 = scmp.lt.s32.totalorder %s324, 31
      %s326 = scalar_select %p325, %s324, 31
      %s327 = smul.addr %s326, 4
      %s328 = scalar_lea.vmem %s0, %s327
      %s329 = smul.u32 16, %s20
      %s330 = smul.u32 16, %s20
      %p331 = scmp.lt.s32.totalorder %s330, 31
      %s332 = scalar_select %p331, %s330, 31
      %s333 = smul.addr %s332, 8
      %s334 = scalar_lea.vmem %s9, %s333
      %s335 = smul.u32 16, %s20
      %v337 = vld [vmem:[%s1] sm:$0xf]
      %v338 = vld [vmem:[%s1 + $0x4] sm:$0xf]
      %v339 = vld [vmem:[%s1 + $0x8] sm:$0xf]
      %v340 = vld [vmem:[%s1 + $0xc] sm:$0xf]
      %v341 = vld [vmem:[%s1 + $0x10] sm:$0xf]
      %v342 = vld [vmem:[%s1 + $0x14] sm:$0xf]
      %v343 = vld [vmem:[%s1 + $0x18] sm:$0xf]
      %v344 = vld [vmem:[%s1 + $0x1c] sm:$0xf]
      %v345 = vld [vmem:[%s1 + $0x20] sm:$0xf]
      %v346 = vld [vmem:[%s1 + $0x24] sm:$0xf]
      %v347 = vld [vmem:[%s1 + $0x28] sm:$0xf]
      %v348 = vld [vmem:[%s1 + $0x2c] sm:$0xf]
      %v349 = vld [vmem:[%s1 + $0x30] sm:$0xf]
      %v350 = vld [vmem:[%s1 + $0x34] sm:$0xf]
      %v351 = vld [vmem:[%s1 + $0x38] sm:$0xf]
      %v352 = vld [vmem:[%s1 + $0x3c] sm:$0xf]
      %v353 = vld [vmem:[%s3] sm:$0xf]
      %v354 = vld [vmem:[%s3 + $0x4] sm:$0xf]
      %v355 = vld [vmem:[%s3 + $0x8] sm:$0xf]
      %v356 = vld [vmem:[%s3 + $0xc] sm:$0xf]
      %v357 = vld [vmem:[%s3 + $0x10] sm:$0xf]
      %v358 = vld [vmem:[%s3 + $0x14] sm:$0xf]
      %v359 = vld [vmem:[%s3 + $0x18] sm:$0xf]
      %v360 = vld [vmem:[%s3 + $0x1c] sm:$0xf]
      %v361 = vld [vmem:[%s3 + $0x20] sm:$0xf]
      %v362 = vld [vmem:[%s3 + $0x24] sm:$0xf]
      %v363 = vld [vmem:[%s3 + $0x28] sm:$0xf]
      %v364 = vld [vmem:[%s3 + $0x2c] sm:$0xf]
      %v365 = vld [vmem:[%s3 + $0x30] sm:$0xf]
      %v366 = vld [vmem:[%s3 + $0x34] sm:$0xf]
      %v367 = vld [vmem:[%s3 + $0x38] sm:$0xf]
      %v368 = vld [vmem:[%s3 + $0x3c] sm:$0xf]
      %v369 = vld [vmem:[%s5] sm:$0xf]
      %v370 = vld [vmem:[%s5 + $0x4] sm:$0xf]
      %v371 = vld [vmem:[%s5 + $0x8] sm:$0xf]
      %v372 = vld [vmem:[%s5 + $0xc] sm:$0xf]
      %v373 = vld [vmem:[%s5 + $0x10] sm:$0xf]
      %v374 = vld [vmem:[%s5 + $0x14] sm:$0xf]
      %v375 = vld [vmem:[%s5 + $0x18] sm:$0xf]
      %v376 = vld [vmem:[%s5 + $0x1c] sm:$0xf]
      %v377 = vld [vmem:[%s5 + $0x20] sm:$0xf]
      %v378 = vld [vmem:[%s5 + $0x24] sm:$0xf]
      %v379 = vld [vmem:[%s5 + $0x28] sm:$0xf]
      %v380 = vld [vmem:[%s5 + $0x2c] sm:$0xf]
      %v381 = vld [vmem:[%s5 + $0x30] sm:$0xf]
      %v382 = vld [vmem:[%s5 + $0x34] sm:$0xf]
      %v383 = vld [vmem:[%s5 + $0x38] sm:$0xf]
      %v384 = vld [vmem:[%s5 + $0x3c] sm:$0xf]
      %v385 = vld [vmem:[%s7] sm:$0xf]
      %v386 = vld [vmem:[%s7 + $0x4] sm:$0xf]
      %v387 = vld [vmem:[%s7 + $0x8] sm:$0xf]
      %v388 = vld [vmem:[%s7 + $0xc] sm:$0xf]
      %v389 = vld [vmem:[%s7 + $0x10] sm:$0xf]
      %v390 = vld [vmem:[%s7 + $0x14] sm:$0xf]
      %v391 = vld [vmem:[%s7 + $0x18] sm:$0xf]
      %v392 = vld [vmem:[%s7 + $0x1c] sm:$0xf]
      %v393 = vld [vmem:[%s7 + $0x20] sm:$0xf]
      %v394 = vld [vmem:[%s7 + $0x24] sm:$0xf]
      %v395 = vld [vmem:[%s7 + $0x28] sm:$0xf]
      %v396 = vld [vmem:[%s7 + $0x2c] sm:$0xf]
      %v397 = vld [vmem:[%s7 + $0x30] sm:$0xf]
      %v398 = vld [vmem:[%s7 + $0x34] sm:$0xf]
      %v399 = vld [vmem:[%s7 + $0x38] sm:$0xf]
      %v400 = vld [vmem:[%s7 + $0x3c] sm:$0xf]
      %v401 = vld [vmem:[%s2] sm:$0x1]
      %v402 = vld [vmem:[%s4] sm:$0x1]
      %v403 = vld [vmem:[%s6] sm:$0x1]
      %v404 = vld [vmem:[%s8] sm:$0x1]
      %v405 = vld [vmem:[%s328] sm:$0xf]
      %v406 = vld [vmem:[%s328 + $0x4] sm:$0xf]
      %v407 = vld [vmem:[%s328 + $0x8] sm:$0xf]
      %v408 = vld [vmem:[%s328 + $0xc] sm:$0xf]
      %v409 = vld [vmem:[%s328 + $0x10] sm:$0xf]
      %v410 = vld [vmem:[%s328 + $0x14] sm:$0xf]
      %v411 = vld [vmem:[%s328 + $0x18] sm:$0xf]
      %v412 = vld [vmem:[%s328 + $0x1c] sm:$0xf]
      %v413 = vld [vmem:[%s328 + $0x20] sm:$0xf]
      %v414 = vld [vmem:[%s328 + $0x24] sm:$0xf]
      %v415 = vld [vmem:[%s328 + $0x28] sm:$0xf]
      %v416 = vld [vmem:[%s328 + $0x2c] sm:$0xf]
      %v417 = vld [vmem:[%s328 + $0x30] sm:$0xf]
      %v418 = vld [vmem:[%s328 + $0x34] sm:$0xf]
      %v419 = vld [vmem:[%s328 + $0x38] sm:$0xf]
      %v420 = vld [vmem:[%s328 + $0x3c] sm:$0xf]
      %v422 = vlaneseq
      %v423 = vshrl.u32 %v422, 7
      %v424 = vsub.s32 0, %v423
      %v425 = vrot.slane %v401, %v424
      %v443 = vunpack.c.l.b16 %v405
      %v444 = vunpack.c.l.b16 %v406
      %v445 = vunpack.c.l.b16 %v407
      %v446 = vunpack.c.l.b16 %v408
      %v447 = vunpack.c.l.b16 %v409
      %v448 = vunpack.c.l.b16 %v410
      %v449 = vunpack.c.l.b16 %v411
      %v450 = vunpack.c.l.b16 %v412
      %v451 = vunpack.c.l.b16 %v413
      %v452 = vunpack.c.l.b16 %v414
      %v453 = vunpack.c.l.b16 %v415
      %v454 = vunpack.c.l.b16 %v416
      %v455 = vunpack.c.l.b16 %v417
      %v456 = vunpack.c.l.b16 %v418
      %v457 = vunpack.c.l.b16 %v419
      %v458 = vunpack.c.l.b16 %v420
      %v459 = vpack.c.b16 %v444, %v443
      %v460 = vpack.c.b16 %v446, %v445
      %v461 = vpack.c.b16 %v448, %v447
      %v462 = vpack.c.b16 %v450, %v449
      %v463 = vpack.c.b16 %v452, %v451
      %v464 = vpack.c.b16 %v454, %v453
      %v465 = vpack.c.b16 %v456, %v455
      %v466 = vpack.c.b16 %v458, %v457
      %v491 = vunpack.c.l.b16 %v337
      %v492 = vunpack.c.l.b16 %v338
      %v493 = vunpack.c.l.b16 %v339
      %v494 = vunpack.c.l.b16 %v340
      %v495 = vunpack.c.l.b16 %v341
      %v496 = vunpack.c.l.b16 %v342
      %v497 = vunpack.c.l.b16 %v343
      %v498 = vunpack.c.l.b16 %v344
      %v499 = vunpack.c.l.b16 %v345
      %v500 = vunpack.c.l.b16 %v346
      %v501 = vunpack.c.l.b16 %v347
      %v502 = vunpack.c.l.b16 %v348
      %v503 = vunpack.c.l.b16 %v349
      %v504 = vunpack.c.l.b16 %v350
      %v505 = vunpack.c.l.b16 %v351
      %v506 = vunpack.c.l.b16 %v352
      %v507 = vpack.c.b16 %v492, %v491
      %v508 = vpack.c.b16 %v494, %v493
      %v509 = vpack.c.b16 %v496, %v495
      %v510 = vpack.c.b16 %v498, %v497
      %v511 = vpack.c.b16 %v500, %v499
      %v512 = vpack.c.b16 %v502, %v501
      %v513 = vpack.c.b16 %v504, %v503
      %v514 = vpack.c.b16 %v506, %v505
      %523 = vmatprep.subr.bf16.mxu0 0
      %524 = vmatpush1.bf16.msra.mxu0 %v507
      %525 = vmatprep.subr.bf16.mxu0 0
      %526 = vmatpush1.bf16.msra.mxu0 %v508
      %527 = vmatprep.subr.bf16.mxu0 0
      %528 = vmatpush1.bf16.msra.mxu0 %v509
      %529 = vmatprep.subr.bf16.mxu0 0
      %530 = vmatpush1.bf16.msra.mxu0 %v510
      %531 = vmatprep.subr.bf16.mxu0 0
      %532 = vmatpush1.bf16.msra.mxu0 %v511
      %533 = vmatprep.subr.bf16.mxu0 0
      %534 = vmatpush1.bf16.msra.mxu0 %v512
      %535 = vmatprep.subr.bf16.mxu0 0
      %536 = vmatpush1.bf16.msra.mxu0 %v513
      %537 = vmatprep.subr.bf16.mxu0 0
      %538 = vmatpush1.bf16.msra.mxu0 %v514
      %539 = vmatprep.subr.bf16.mxu0 0
      %540 = vmatpush1.bf16.msra.mxu0 0
      %541 = vmatprep.subr.bf16.mxu0 0
      %542 = vmatpush1.bf16.msra.mxu0 0
      %543 = vmatprep.subr.bf16.mxu0 0
      %544 = vmatpush1.bf16.msra.mxu0 0
      %545 = vmatprep.subr.bf16.mxu0 0
      %546 = vmatpush1.bf16.msra.mxu0 0
      %547 = vmatprep.subr.bf16.mxu0 0
      %548 = vmatpush1.bf16.msra.mxu0 0
      %549 = vmatprep.subr.bf16.mxu0 0
      %550 = vmatpush1.bf16.msra.mxu0 0
      %551 = vmatprep.subr.bf16.mxu0 0
      %552 = vmatpush1.bf16.msra.mxu0 0
      %553 = vmatprep.subr.bf16.mxu0 0
      %554 = vmatpush1.bf16.msra.mxu0 0
      %555 = vmatprep.mubr.bf16.mxu0 0
      %556 = vmatmul.mubr.bf16.gmra.mrb[0].mxu0 %v459
      %v557 = vpop.f32.mrb[0].mxu0
      %v558 = vadd.f32 %v425, %v557
      %v559 = vpop.f32.mrb[0].mxu0
      %v560 = vpop.f32.mrb[0].mxu0
      %v561 = vadd.f32 %v425, %v560
      %v562 = vpop.f32.mrb[0].mxu0
      %563 = vmatprep.mubr.bf16.mxu0 0
      %564 = vmatmul.mubr.bf16.gmra.mrb[0].mxu0 %v460
      %v565 = vpop.f32.mrb[0].mxu0
      %v566 = vadd.f32 %v425, %v565
      %v567 = vpop.f32.mrb[0].mxu0
      %v568 = vpop.f32.mrb[0].mxu0
      %v569 = vadd.f32 %v425, %v568
      %v570 = vpop.f32.mrb[0].mxu0
      %571 = vmatprep.mubr.bf16.mxu0 0
      %572 = vmatmul.mubr.bf16.gmra.mrb[0].mxu0 %v461
      %v573 = vpop.f32.mrb[0].mxu0
      %v574 = vadd.f32 %v425, %v573
      %v575 = vpop.f32.mrb[0].mxu0
      %v576 = vpop.f32.mrb[0].mxu0
      %v577 = vadd.f32 %v425, %v576
      %v578 = vpop.f32.mrb[0].mxu0
      %579 = vmatprep.mubr.bf16.mxu0 0
      %580 = vmatmul.mubr.bf16.gmra.mrb[0].mxu0 %v462
      %v581 = vpop.f32.mrb[0].mxu0
      %v582 = vadd.f32 %v425, %v581
      %v583 = vpop.f32.mrb[0].mxu0
      %v584 = vpop.f32.mrb[0].mxu0
      %v585 = vadd.f32 %v425, %v584
      %v586 = vpop.f32.mrb[0].mxu0
      %587 = vmatprep.mubr.bf16.mxu0 0
      %588 = vmatmul.mubr.bf16.gmra.mrb[0].mxu0 %v463
      %v589 = vpop.f32.mrb[0].mxu0
      %v590 = vadd.f32 %v425, %v589
      %v591 = vpop.f32.mrb[0].mxu0
      %v592 = vpop.f32.mrb[0].mxu0
      %v593 = vadd.f32 %v425, %v592
      %v594 = vpop.f32.mrb[0].mxu0
      %595 = vmatprep.mubr.bf16.mxu0 0
      %596 = vmatmul.mubr.bf16.gmra.mrb[0].mxu0 %v464
      %v597 = vpop.f32.mrb[0].mxu0
      %v598 = vadd.f32 %v425, %v597
      %v599 = vpop.f32.mrb[0].mxu0
      %v600 = vpop.f32.mrb[0].mxu0
      %v601 = vadd.f32 %v425, %v600
      %v602 = vpop.f32.mrb[0].mxu0
      %603 = vmatprep.mubr.bf16.mxu0 0
      %604 = vmatmul.mubr.bf16.gmra.mrb[0].mxu0 %v465
      %v605 = vpop.f32.mrb[0].mxu0
      %v606 = vadd.f32 %v425, %v605
      %v607 = vpop.f32.mrb[0].mxu0
      %v608 = vpop.f32.mrb[0].mxu0
      %v609 = vadd.f32 %v425, %v608
      %v610 = vpop.f32.mrb[0].mxu0
      %611 = vmatprep.mubr.bf16.mxu0 0
      %612 = vmatmul.mubr.bf16.gmra.mrb[0].mxu0 %v466
      %v613 = vpop.f32.mrb[0].mxu0
      %v614 = vadd.f32 %v425, %v613
      %v615 = vpop.f32.mrb[0].mxu0
      %v616 = vpop.f32.mrb[0].mxu0
      %v617 = vadd.f32 %v425, %v616
      %v618 = vpop.f32.mrb[0].mxu0
      %619 = vdwg.mxu0
      %v620 = vmax.f32 %v558, 0.0
      %v621 = vmax.f32 %v561, 0.0
      %v622 = vmax.f32 %v566, 0.0
      %v623 = vmax.f32 %v569, 0.0
      %v624 = vmax.f32 %v574, 0.0
      %v625 = vmax.f32 %v577, 0.0
      %v626 = vmax.f32 %v582, 0.0
      %v627 = vmax.f32 %v585, 0.0
      %v628 = vmax.f32 %v590, 0.0
      %v629 = vmax.f32 %v593, 0.0
      %v630 = vmax.f32 %v598, 0.0
      %v631 = vmax.f32 %v601, 0.0
      %v632 = vmax.f32 %v606, 0.0
      %v633 = vmax.f32 %v609, 0.0
      %v634 = vmax.f32 %v614, 0.0
      %v635 = vmax.f32 %v617, 0.0
      %v636 = vpack.c.bf16 %v621, %v620
      %v637 = vpack.c.bf16 %v623, %v622
      %v638 = vpack.c.bf16 %v625, %v624
      %v639 = vpack.c.bf16 %v627, %v626
      %v640 = vpack.c.bf16 %v629, %v628
      %v641 = vpack.c.bf16 %v631, %v630
      %v642 = vpack.c.bf16 %v633, %v632
      %v643 = vpack.c.bf16 %v635, %v634
      %v645 = vlaneseq
      %v646 = vshrl.u32 %v645, 7
      %v647 = vsub.s32 0, %v646
      %v648 = vrot.slane %v402, %v647
      %v666 = vunpack.c.l.b16 %v353
      %v667 = vunpack.c.l.b16 %v354
      %v668 = vunpack.c.l.b16 %v355
      %v669 = vunpack.c.l.b16 %v356
      %v670 = vunpack.c.l.b16 %v357
      %v671 = vunpack.c.l.b16 %v358
      %v672 = vunpack.c.l.b16 %v359
      %v673 = vunpack.c.l.b16 %v360
      %v674 = vunpack.c.l.b16 %v361
      %v675 = vunpack.c.l.b16 %v362
      %v676 = vunpack.c.l.b16 %v363
      %v677 = vunpack.c.l.b16 %v364
      %v678 = vunpack.c.l.b16 %v365
      %v679 = vunpack.c.l.b16 %v366
      %v680 = vunpack.c.l.b16 %v367
      %v681 = vunpack.c.l.b16 %v368
      %v682 = vpack.c.b16 %v667, %v666
      %v683 = vpack.c.b16 %v669, %v668
      %v684 = vpack.c.b16 %v671, %v670
      %v685 = vpack.c.b16 %v673, %v672
      %v686 = vpack.c.b16 %v675, %v674
      %v687 = vpack.c.b16 %v677, %v676
      %v688 = vpack.c.b16 %v679, %v678
      %v689 = vpack.c.b16 %v681, %v680
      %698 = vmatprep.subr.bf16.mxu0 0
      %699 = vmatpush1.bf16.msra.mxu0 %v682
      %700 = vmatprep.subr.bf16.mxu0 0
      %701 = vmatpush1.bf16.msra.mxu0 %v683
      %702 = vmatprep.subr.bf16.mxu0 0
      %703 = vmatpush1.bf16.msra.mxu0 %v684
      %704 = vmatprep.subr.bf16.mxu0 0
      %705 = vmatpush1.bf16.msra.mxu0 %v685
      %706 = vmatprep.subr.bf16.mxu0 0
      %707 = vmatpush1.bf16.msra.mxu0 %v686
      %708 = vmatprep.subr.bf16.mxu0 0
      %709 = vmatpush1.bf16.msra.mxu0 %v687
      %710 = vmatprep.subr.bf16.mxu0 0
      %711 = vmatpush1.bf16.msra.mxu0 %v688
      %712 = vmatprep.subr.bf16.mxu0 0
      %713 = vmatpush1.bf16.msra.mxu0 %v689
      %714 = vmatprep.subr.bf16.mxu0 0
      %715 = vmatpush1.bf16.msra.mxu0 0
      %716 = vmatprep.subr.bf16.mxu0 0
      %717 = vmatpush1.bf16.msra.mxu0 0
      %718 = vmatprep.subr.bf16.mxu0 0
      %719 = vmatpush1.bf16.msra.mxu0 0
      %720 = vmatprep.subr.bf16.mxu0 0
      %721 = vmatpush1.bf16.msra.mxu0 0
      %722 = vmatprep.subr.bf16.mxu0 0
      %723 = vmatpush1.bf16.msra.mxu0 0
      %724 = vmatprep.subr.bf16.mxu0 0
      %725 = vmatpush1.bf16.msra.mxu0 0
      %726 = vmatprep.subr.bf16.mxu0 0
      %727 = vmatpush1.bf16.msra.mxu0 0
      %728 = vmatprep.subr.bf16.mxu0 0
      %729 = vmatpush1.bf16.msra.mxu0 0
      %730 = vmatprep.mubr.bf16.mxu0 0
      %731 = vmatmul.mubr.bf16.gmra.mrb[0].mxu0 %v636
      %v732 = vpop.f32.mrb[0].mxu0
      %v733 = vadd.f32 %v648, %v732
      %v734 = vpop.f32.mrb[0].mxu0
      %v735 = vpop.f32.mrb[0].mxu0
      %v736 = vadd.f32 %v648, %v735
      %v737 = vpop.f32.mrb[0].mxu0
      %738 = vmatprep.mubr.bf16.mxu0 0
      %739 = vmatmul.mubr.bf16.gmra.mrb[0].mxu0 %v637
      %v740 = vpop.f32.mrb[0].mxu0
      %v741 = vadd.f32 %v648, %v740
      %v742 = vpop.f32.mrb[0].mxu0
      %v743 = vpop.f32.mrb[0].mxu0
      %v744 = vadd.f32 %v648, %v743
      %v745 = vpop.f32.mrb[0].mxu0
      %746 = vmatprep.mubr.bf16.mxu0 0
      %747 = vmatmul.mubr.bf16.gmra.mrb[0].mxu0 %v638
      %v748 = vpop.f32.mrb[0].mxu0
      %v749 = vadd.f32 %v648, %v748
      %v750 = vpop.f32.mrb[0].mxu0
      %v751 = vpop.f32.mrb[0].mxu0
      %v752 = vadd.f32 %v648, %v751
      %v753 = vpop.f32.mrb[0].mxu0
      %754 = vmatprep.mubr.bf16.mxu0 0
      %755 = vmatmul.mubr.bf16.gmra.mrb[0].mxu0 %v639
      %v756 = vpop.f32.mrb[0].mxu0
      %v757 = vadd.f32 %v648, %v756
      %v758 = vpop.f32.mrb[0].mxu0
      %v759 = vpop.f32.mrb[0].mxu0
      %v760 = vadd.f32 %v648, %v759
      %v761 = vpop.f32.mrb[0].mxu0
      %762 = vmatprep.mubr.bf16.mxu0 0
      %763 = vmatmul.mubr.bf16.gmra.mrb[0].mxu0 %v640
      %v764 = vpop.f32.mrb[0].mxu0
      %v765 = vadd.f32 %v648, %v764
      %v766 = vpop.f32.mrb[0].mxu0
      %v767 = vpop.f32.mrb[0].mxu0
      %v768 = vadd.f32 %v648, %v767
      %v769 = vpop.f32.mrb[0].mxu0
      %770 = vmatprep.mubr.bf16.mxu0 0
      %771 = vmatmul.mubr.bf16.gmra.mrb[0].mxu0 %v641
      %v772 = vpop.f32.mrb[0].mxu0
      %v773 = vadd.f32 %v648, %v772
      %v774 = vpop.f32.mrb[0].mxu0
      %v775 = vpop.f32.mrb[0].mxu0
      %v776 = vadd.f32 %v648, %v775
      %v777 = vpop.f32.mrb[0].mxu0
      %778 = vmatprep.mubr.bf16.mxu0 0
      %779 = vmatmul.mubr.bf16.gmra.mrb[0].mxu0 %v642
      %v780 = vpop.f32.mrb[0].mxu0
      %v781 = vadd.f32 %v648, %v780
      %v782 = vpop.f32.mrb[0].mxu0
      %v783 = vpop.f32.mrb[0].mxu0
      %v784 = vadd.f32 %v648, %v783
      %v785 = vpop.f32.mrb[0].mxu0
      %786 = vmatprep.mubr.bf16.mxu0 0
      %787 = vmatmul.mubr.bf16.gmra.mrb[0].mxu0 %v643
      %v788 = vpop.f32.mrb[0].mxu0
      %v789 = vadd.f32 %v648, %v788
      %v790 = vpop.f32.mrb[0].mxu0
      %v791 = vpop.f32.mrb[0].mxu0
      %v792 = vadd.f32 %v648, %v791
      %v793 = vpop.f32.mrb[0].mxu0
      %794 = vdwg.mxu0
      %v795 = vmax.f32 %v733, 0.0
      %v796 = vmax.f32 %v736, 0.0
      %v797 = vmax.f32 %v741, 0.0
      %v798 = vmax.f32 %v744, 0.0
      %v799 = vmax.f32 %v749, 0.0
      %v800 = vmax.f32 %v752, 0.0
      %v801 = vmax.f32 %v757, 0.0
      %v802 = vmax.f32 %v760, 0.0
      %v803 = vmax.f32 %v765, 0.0
      %v804 = vmax.f32 %v768, 0.0
      %v805 = vmax.f32 %v773, 0.0
      %v806 = vmax.f32 %v776, 0.0
      %v807 = vmax.f32 %v781, 0.0
      %v808 = vmax.f32 %v784, 0.0
      %v809 = vmax.f32 %v789, 0.0
      %v810 = vmax.f32 %v792, 0.0
      %v811 = vpack.c.bf16 %v796, %v795
      %v812 = vpack.c.bf16 %v798, %v797
      %v813 = vpack.c.bf16 %v800, %v799
      %v814 = vpack.c.bf16 %v802, %v801
      %v815 = vpack.c.bf16 %v804, %v803
      %v816 = vpack.c.bf16 %v806, %v805
      %v817 = vpack.c.bf16 %v808, %v807
      %v818 = vpack.c.bf16 %v810, %v809
      %v820 = vlaneseq
      %v821 = vshrl.u32 %v820, 7
      %v822 = vsub.s32 0, %v821
      %v823 = vrot.slane %v403, %v822
      %v841 = vunpack.c.l.b16 %v369
      %v842 = vunpack.c.l.b16 %v370
      %v843 = vunpack.c.l.b16 %v371
      %v844 = vunpack.c.l.b16 %v372
      %v845 = vunpack.c.l.b16 %v373
      %v846 = vunpack.c.l.b16 %v374
      %v847 = vunpack.c.l.b16 %v375
      %v848 = vunpack.c.l.b16 %v376
      %v849 = vunpack.c.l.b16 %v377
      %v850 = vunpack.c.l.b16 %v378
      %v851 = vunpack.c.l.b16 %v379
      %v852 = vunpack.c.l.b16 %v380
      %v853 = vunpack.c.l.b16 %v381
      %v854 = vunpack.c.l.b16 %v382
      %v855 = vunpack.c.l.b16 %v383
      %v856 = vunpack.c.l.b16 %v384
      %v857 = vpack.c.b16 %v842, %v841
      %v858 = vpack.c.b16 %v844, %v843
      %v859 = vpack.c.b16 %v846, %v845
      %v860 = vpack.c.b16 %v848, %v847
      %v861 = vpack.c.b16 %v850, %v849
      %v862 = vpack.c.b16 %v852, %v851
      %v863 = vpack.c.b16 %v854, %v853
      %v864 = vpack.c.b16 %v856, %v855
      %873 = vmatprep.subr.bf16.mxu0 0
      %874 = vmatpush1.bf16.msra.mxu0 %v857
      %875 = vmatprep.subr.bf16.mxu0 0
      %876 = vmatpush1.bf16.msra.mxu0 %v858
      %877 = vmatprep.subr.bf16.mxu0 0
      %878 = vmatpush1.bf16.msra.mxu0 %v859
      %879 = vmatprep.subr.bf16.mxu0 0
      %880 = vmatpush1.bf16.msra.mxu0 %v860
      %881 = vmatprep.subr.bf16.mxu0 0
      %882 = vmatpush1.bf16.msra.mxu0 %v861
      %883 = vmatprep.subr.bf16.mxu0 0
      %884 = vmatpush1.bf16.msra.mxu0 %v862
      %885 = vmatprep.subr.bf16.mxu0 0
      %886 = vmatpush1.bf16.msra.mxu0 %v863
      %887 = vmatprep.subr.bf16.mxu0 0
      %888 = vmatpush1.bf16.msra.mxu0 %v864
      %889 = vmatprep.subr.bf16.mxu0 0
      %890 = vmatpush1.bf16.msra.mxu0 0
      %891 = vmatprep.subr.bf16.mxu0 0
      %892 = vmatpush1.bf16.msra.mxu0 0
      %893 = vmatprep.subr.bf16.mxu0 0
      %894 = vmatpush1.bf16.msra.mxu0 0
      %895 = vmatprep.subr.bf16.mxu0 0
      %896 = vmatpush1.bf16.msra.mxu0 0
      %897 = vmatprep.subr.bf16.mxu0 0
      %898 = vmatpush1.bf16.msra.mxu0 0
      %899 = vmatprep.subr.bf16.mxu0 0
      %900 = vmatpush1.bf16.msra.mxu0 0
      %901 = vmatprep.subr.bf16.mxu0 0
      %902 = vmatpush1.bf16.msra.mxu0 0
      %903 = vmatprep.subr.bf16.mxu0 0
      %904 = vmatpush1.bf16.msra.mxu0 0
      %905 = vmatprep.mubr.bf16.mxu0 0
      %906 = vmatmul.mubr.bf16.gmra.mrb[0].mxu0 %v811
      %v907 = vpop.f32.mrb[0].mxu0
      %v908 = vadd.f32 %v823, %v907
      %v909 = vpop.f32.mrb[0].mxu0
      %v910 = vpop.f32.mrb[0].mxu0
      %v911 = vadd.f32 %v823, %v910
      %v912 = vpop.f32.mrb[0].mxu0
      %913 = vmatprep.mubr.bf16.mxu0 0
      %914 = vmatmul.mubr.bf16.gmra.mrb[0].mxu0 %v812
      %v915 = vpop.f32.mrb[0].mxu0
      %v916 = vadd.f32 %v823, %v915
      %v917 = vpop.f32.mrb[0].mxu0
      %v918 = vpop.f32.mrb[0].mxu0
      %v919 = vadd.f32 %v823, %v918
      %v920 = vpop.f32.mrb[0].mxu0
      %921 = vmatprep.mubr.bf16.mxu0 0
      %922 = vmatmul.mubr.bf16.gmra.mrb[0].mxu0 %v813
      %v923 = vpop.f32.mrb[0].mxu0
      %v924 = vadd.f32 %v823, %v923
      %v925 = vpop.f32.mrb[0].mxu0
      %v926 = vpop.f32.mrb[0].mxu0
      %v927 = vadd.f32 %v823, %v926
      %v928 = vpop.f32.mrb[0].mxu0
      %929 = vmatprep.mubr.bf16.mxu0 0
      %930 = vmatmul.mubr.bf16.gmra.mrb[0].mxu0 %v814
      %v931 = vpop.f32.mrb[0].mxu0
      %v932 = vadd.f32 %v823, %v931
      %v933 = vpop.f32.mrb[0].mxu0
      %v934 = vpop.f32.mrb[0].mxu0
      %v935 = vadd.f32 %v823, %v934
      %v936 = vpop.f32.mrb[0].mxu0
      %937 = vmatprep.mubr.bf16.mxu0 0
      %938 = vmatmul.mubr.bf16.gmra.mrb[0].mxu0 %v815
      %v939 = vpop.f32.mrb[0].mxu0
      %v940 = vadd.f32 %v823, %v939
      %v941 = vpop.f32.mrb[0].mxu0
      %v942 = vpop.f32.mrb[0].mxu0
      %v943 = vadd.f32 %v823, %v942
      %v944 = vpop.f32.mrb[0].mxu0
      %945 = vmatprep.mubr.bf16.mxu0 0
      %946 = vmatmul.mubr.bf16.gmra.mrb[0].mxu0 %v816
      %v947 = vpop.f32.mrb[0].mxu0
      %v948 = vadd.f32 %v823, %v947
      %v949 = vpop.f32.mrb[0].mxu0
      %v950 = vpop.f32.mrb[0].mxu0
      %v951 = vadd.f32 %v823, %v950
      %v952 = vpop.f32.mrb[0].mxu0
      %953 = vmatprep.mubr.bf16.mxu0 0
      %954 = vmatmul.mubr.bf16.gmra.mrb[0].mxu0 %v817
      %v955 = vpop.f32.mrb[0].mxu0
      %v956 = vadd.f32 %v823, %v955
      %v957 = vpop.f32.mrb[0].mxu0
      %v958 = vpop.f32.mrb[0].mxu0
      %v959 = vadd.f32 %v823, %v958
      %v960 = vpop.f32.mrb[0].mxu0
      %961 = vmatprep.mubr.bf16.mxu0 0
      %962 = vmatmul.mubr.bf16.gmra.mrb[0].mxu0 %v818
      %v963 = vpop.f32.mrb[0].mxu0
      %v964 = vadd.f32 %v823, %v963
      %v965 = vpop.f32.mrb[0].mxu0
      %v966 = vpop.f32.mrb[0].mxu0
      %v967 = vadd.f32 %v823, %v966
      %v968 = vpop.f32.mrb[0].mxu0
      %969 = vdwg.mxu0
      %v970 = vmax.f32 %v908, 0.0
      %v971 = vmax.f32 %v911, 0.0
      %v972 = vmax.f32 %v916, 0.0
      %v973 = vmax.f32 %v919, 0.0
      %v974 = vmax.f32 %v924, 0.0
      %v975 = vmax.f32 %v927, 0.0
      %v976 = vmax.f32 %v932, 0.0
      %v977 = vmax.f32 %v935, 0.0
      %v978 = vmax.f32 %v940, 0.0
      %v979 = vmax.f32 %v943, 0.0
      %v980 = vmax.f32 %v948, 0.0
      %v981 = vmax.f32 %v951, 0.0
      %v982 = vmax.f32 %v956, 0.0
      %v983 = vmax.f32 %v959, 0.0
      %v984 = vmax.f32 %v964, 0.0
      %v985 = vmax.f32 %v967, 0.0
      %v986 = vpack.c.bf16 %v971, %v970
      %v987 = vpack.c.bf16 %v973, %v972
      %v988 = vpack.c.bf16 %v975, %v974
      %v989 = vpack.c.bf16 %v977, %v976
      %v990 = vpack.c.bf16 %v979, %v978
      %v991 = vpack.c.bf16 %v981, %v980
      %v992 = vpack.c.bf16 %v983, %v982
      %v993 = vpack.c.bf16 %v985, %v984
      %v995 = vlaneseq
      %v996 = vshrl.u32 %v995, 7
      %v997 = vsub.s32 0, %v996
      %v998 = vrot.slane %v404, %v997
      %v1016 = vunpack.c.l.b16 %v385
      %v1017 = vunpack.c.l.b16 %v386
      %v1018 = vunpack.c.l.b16 %v387
      %v1019 = vunpack.c.l.b16 %v388
      %v1020 = vunpack.c.l.b16 %v389
      %v1021 = vunpack.c.l.b16 %v390
      %v1022 = vunpack.c.l.b16 %v391
      %v1023 = vunpack.c.l.b16 %v392
      %v1024 = vunpack.c.l.b16 %v393
      %v1025 = vunpack.c.l.b16 %v394
      %v1026 = vunpack.c.l.b16 %v395
      %v1027 = vunpack.c.l.b16 %v396
      %v1028 = vunpack.c.l.b16 %v397
      %v1029 = vunpack.c.l.b16 %v398
      %v1030 = vunpack.c.l.b16 %v399
      %v1031 = vunpack.c.l.b16 %v400
      %v1032 = vpack.c.b16 %v1017, %v1016
      %v1033 = vpack.c.b16 %v1019, %v1018
      %v1034 = vpack.c.b16 %v1021, %v1020
      %v1035 = vpack.c.b16 %v1023, %v1022
      %v1036 = vpack.c.b16 %v1025, %v1024
      %v1037 = vpack.c.b16 %v1027, %v1026
      %v1038 = vpack.c.b16 %v1029, %v1028
      %v1039 = vpack.c.b16 %v1031, %v1030
      %1048 = vmatprep.subr.bf16.mxu0 0
      %1049 = vmatpush1.bf16.msra.mxu0 %v1032
      %1050 = vmatprep.subr.bf16.mxu0 0
      %1051 = vmatpush1.bf16.msra.mxu0 %v1033
      %1052 = vmatprep.subr.bf16.mxu0 0
      %1053 = vmatpush1.bf16.msra.mxu0 %v1034
      %1054 = vmatprep.subr.bf16.mxu0 0
      %1055 = vmatpush1.bf16.msra.mxu0 %v1035
      %1056 = vmatprep.subr.bf16.mxu0 0
      %1057 = vmatpush1.bf16.msra.mxu0 %v1036
      %1058 = vmatprep.subr.bf16.mxu0 0
      %1059 = vmatpush1.bf16.msra.mxu0 %v1037
      %1060 = vmatprep.subr.bf16.mxu0 0
      %1061 = vmatpush1.bf16.msra.mxu0 %v1038
      %1062 = vmatprep.subr.bf16.mxu0 0
      %1063 = vmatpush1.bf16.msra.mxu0 %v1039
      %1064 = vmatprep.subr.bf16.mxu0 0
      %1065 = vmatpush1.bf16.msra.mxu0 0
      %1066 = vmatprep.subr.bf16.mxu0 0
      %1067 = vmatpush1.bf16.msra.mxu0 0
      %1068 = vmatprep.subr.bf16.mxu0 0
      %1069 = vmatpush1.bf16.msra.mxu0 0
      %1070 = vmatprep.subr.bf16.mxu0 0
      %1071 = vmatpush1.bf16.msra.mxu0 0
      %1072 = vmatprep.subr.bf16.mxu0 0
      %1073 = vmatpush1.bf16.msra.mxu0 0
      %1074 = vmatprep.subr.bf16.mxu0 0
      %1075 = vmatpush1.bf16.msra.mxu0 0
      %1076 = vmatprep.subr.bf16.mxu0 0
      %1077 = vmatpush1.bf16.msra.mxu0 0
      %1078 = vmatprep.subr.bf16.mxu0 0
      %1079 = vmatpush1.bf16.msra.mxu0 0
      %1080 = vmatprep.mubr.bf16.mxu0 0
      %1081 = vmatmul.mubr.bf16.gmra.mrb[0].mxu0 %v986
      %v1082 = vpop.f32.mrb[0].mxu0
      %v1083 = vadd.f32 %v998, %v1082
      %v1084 = vpop.f32.mrb[0].mxu0
      %v1085 = vpop.f32.mrb[0].mxu0
      %v1086 = vadd.f32 %v998, %v1085
      %v1087 = vpop.f32.mrb[0].mxu0
      %1088 = vmatprep.mubr.bf16.mxu0 0
      %1089 = vmatmul.mubr.bf16.gmra.mrb[0].mxu0 %v987
      %v1090 = vpop.f32.mrb[0].mxu0
      %v1091 = vadd.f32 %v998, %v1090
      %v1092 = vpop.f32.mrb[0].mxu0
      %v1093 = vpop.f32.mrb[0].mxu0
      %v1094 = vadd.f32 %v998, %v1093
      %v1095 = vpop.f32.mrb[0].mxu0
      %1096 = vmatprep.mubr.bf16.mxu0 0
      %1097 = vmatmul.mubr.bf16.gmra.mrb[0].mxu0 %v988
      %v1098 = vpop.f32.mrb[0].mxu0
      %v1099 = vadd.f32 %v998, %v1098
      %v1100 = vpop.f32.mrb[0].mxu0
      %v1101 = vpop.f32.mrb[0].mxu0
      %v1102 = vadd.f32 %v998, %v1101
      %v1103 = vpop.f32.mrb[0].mxu0
      %1104 = vmatprep.mubr.bf16.mxu0 0
      %1105 = vmatmul.mubr.bf16.gmra.mrb[0].mxu0 %v989
      %v1106 = vpop.f32.mrb[0].mxu0
      %v1107 = vadd.f32 %v998, %v1106
      %v1108 = vpop.f32.mrb[0].mxu0
      %v1109 = vpop.f32.mrb[0].mxu0
      %v1110 = vadd.f32 %v998, %v1109
      %v1111 = vpop.f32.mrb[0].mxu0
      %1112 = vmatprep.mubr.bf16.mxu0 0
      %1113 = vmatmul.mubr.bf16.gmra.mrb[0].mxu0 %v990
      %v1114 = vpop.f32.mrb[0].mxu0
      %v1115 = vadd.f32 %v998, %v1114
      %v1116 = vpop.f32.mrb[0].mxu0
      %v1117 = vpop.f32.mrb[0].mxu0
      %v1118 = vadd.f32 %v998, %v1117
      %v1119 = vpop.f32.mrb[0].mxu0
      %1120 = vmatprep.mubr.bf16.mxu0 0
      %1121 = vmatmul.mubr.bf16.gmra.mrb[0].mxu0 %v991
      %v1122 = vpop.f32.mrb[0].mxu0
      %v1123 = vadd.f32 %v998, %v1122
      %v1124 = vpop.f32.mrb[0].mxu0
      %v1125 = vpop.f32.mrb[0].mxu0
      %v1126 = vadd.f32 %v998, %v1125
      %v1127 = vpop.f32.mrb[0].mxu0
      %1128 = vmatprep.mubr.bf16.mxu0 0
      %1129 = vmatmul.mubr.bf16.gmra.mrb[0].mxu0 %v992
      %v1130 = vpop.f32.mrb[0].mxu0
      %v1131 = vadd.f32 %v998, %v1130
      %v1132 = vpop.f32.mrb[0].mxu0
      %v1133 = vpop.f32.mrb[0].mxu0
      %v1134 = vadd.f32 %v998, %v1133
      %v1135 = vpop.f32.mrb[0].mxu0
      %1136 = vmatprep.mubr.bf16.mxu0 0
      %1137 = vmatmul.mubr.bf16.gmra.mrb[0].mxu0 %v993
      %v1138 = vpop.f32.mrb[0].mxu0
      %v1139 = vadd.f32 %v998, %v1138
      %v1140 = vpop.f32.mrb[0].mxu0
      %v1141 = vpop.f32.mrb[0].mxu0
      %v1142 = vadd.f32 %v998, %v1141
      %v1143 = vpop.f32.mrb[0].mxu0
      %1144 = vdwg.mxu0
      %1145 = vst [vmem:[%s334] sm:$0xff] %v1083
      %1146 = vst [vmem:[%s334 + $0x8] sm:$0xff] %v1086
      %1147 = vst [vmem:[%s334 + $0x10] sm:$0xff] %v1091
      %1148 = vst [vmem:[%s334 + $0x18] sm:$0xff] %v1094
      %1149 = vst [vmem:[%s334 + $0x20] sm:$0xff] %v1099
      %1150 = vst [vmem:[%s334 + $0x28] sm:$0xff] %v1102
      %1151 = vst [vmem:[%s334 + $0x30] sm:$0xff] %v1107
      %1152 = vst [vmem:[%s334 + $0x38] sm:$0xff] %v1110
      %1153 = vst [vmem:[%s334 + $0x40] sm:$0xff] %v1115
      %1154 = vst [vmem:[%s334 + $0x48] sm:$0xff] %v1118
      %1155 = vst [vmem:[%s334 + $0x50] sm:$0xff] %v1123
      %1156 = vst [vmem:[%s334 + $0x58] sm:$0xff] %v1126
      %1157 = vst [vmem:[%s334 + $0x60] sm:$0xff] %v1131
      %1158 = vst [vmem:[%s334 + $0x68] sm:$0xff] %v1134
      %1159 = vst [vmem:[%s334 + $0x70] sm:$0xff] %v1139
      %1160 = vst [vmem:[%s334 + $0x78] sm:$0xff] %v1142
      %s1161 = smul.u32 16, %s20
      %p1162 = scmp.lt.s32.totalorder %s1161, 31
      %s1163 = scalar_select %p1162, %s1161, 31
      %s1164 = smul.addr %s1163, 8
      %s1165 = scalar_lea.vmem %s9, %s1164
      // Predicated region
      $region57: #{mpc_net_forward.1} parent=55 // pred_check
        %p1166 = pneg %p232
      $region58: #{mpc_net_forward.1} parent=55 // pred_check_branch
        %1168 = sbr.rel (%p1166) target = $region60
      $region59: #{mpc_net_forward.1} parent=55 // pred_region
        %s1169 = smul.u32 16, %s20
      $region60: #{mpc_net_forward.1} parent=55 // pred_fallthru
        _
    $region56: #{mpc_net_forward.1} parent=5 // pred_fallthru
      _
    %p1170 = scmp.le.s32.totalorder 2, %s15
    // Predicated region
    $region61: #{mpc_net_forward.1} parent=5 // pred_check
      %p1171 = pneg %p1170
    $region62: #{mpc_net_forward.1} parent=5 // pred_check_branch
      %1173 = sbr.rel (%p1171) target = $region64
    $region63: #{mpc_net_forward.1} parent=5 // pred_region
      %s1174 = ssub.s32 %s15, 2
      // Predicated region
      $region65: #{mpc_net_forward.1} parent=63 // pred_check
        %p1175 = pneg %p238
      $region66: #{mpc_net_forward.1} parent=63 // pred_check_branch
        %1177 = sbr.rel (%p1175) target = $region68
      $region67: #{mpc_net_forward.1} parent=63 // pred_region
        %s1178 = smul.u32 16, %s21
        %p1179 = scmp.lt.s32.totalorder %s1178, 31
        %s1180 = scalar_select %p1179, %s1178, 31
        %s1181 = smul.addr %s1180, 8
        %s1182 = scalar_lea.vmem %s9, %s1181
      $region68: #{mpc_net_forward.1} parent=63 // pred_fallthru
        _
    $region64: #{mpc_net_forward.1} parent=5 // pred_fallthru
      _
  $region6: #{mpc_net_forward.1} parent=0 // loop_footer
    %s19 = sadd.s32 1, %s15
  $region7: #{mpc_net_forward.1} parent=0 // loop_footer_branch
    %14 = sbr.rel target = $region3
  $region8: #{mpc_net_forward.1} parent=0 // loop_exit
    _

</llo_original>
